<compile_context>
chip_gen: v6e
topology: v6e:2x2x1
jax: 0.10.0
libtpu: 0.0.40
codegen_flags: <defaults>
</compile_context>

<pallas_src>
import jax
import jax.numpy as jnp
import numpy as np
from jax.experimental import pallas as pl
from jax.experimental.pallas import tpu as pltpu

_BN_EPS = 1e-5


# ---------------------------------------------------------------------------
# pltpu.roll rotation-direction probe (run once per process, cached).
# We need shifted[i] == h[(i + off) % S]; this guards against either rotation
# convention of the hardware rotate op so the conv taps always line up.
# (Kept despite the "minor" review note: it is a one-time tiny compile and it
#  removes any correctness risk from pinning the convention.)
# ---------------------------------------------------------------------------
_ROLL_IS_NUMPY = None


def _roll_probe_kernel(x_ref, o_ref):
    o_ref[...] = pltpu.roll(x_ref[...], 1, 1)


def _roll_follows_numpy():
    global _ROLL_IS_NUMPY
    if _ROLL_IS_NUMPY is None:
        x = jnp.broadcast_to(jnp.arange(128, dtype=jnp.float32), (8, 128))
        y = pl.pallas_call(
            _roll_probe_kernel,
            out_shape=jax.ShapeDtypeStruct((8, 128), jnp.float32),
        )(x)
        y = np.asarray(jax.block_until_ready(y))
        # numpy convention: out[i] = in[i - 1]  ->  out[..., 0] == 127
        _ROLL_IS_NUMPY = bool(y[0, 0] == 127.0)
    return _ROLL_IS_NUMPY


# ---------------------------------------------------------------------------
# host-side helpers
# ---------------------------------------------------------------------------
def _fold_bn(w, b, bn, eps=_BN_EPS):
    """Fold eval-mode BatchNorm2d into the preceding conv (weight OIHW, bias (O,))."""
    gamma, beta, mean, var = bn
    a = gamma / jnp.sqrt(var + eps)
    return w * a[:, None, None, None], a * (b - mean) + beta


# ---------------------------------------------------------------------------
# fused SpatialGate forward
# ---------------------------------------------------------------------------
def bam_spatial_gate(x_nchw, params, dilation_val=4):
    B, C, H, W = x_nchw.shape
    S = H * W
    S_pad = ((S + 127) // 128) * 128            # lane-dense loads/stores
    Cr = params["w0"].shape[0]
    dil = dilation_val
    in_dtype = x_nchw.dtype
    mxu_dtype = in_dtype if in_dtype == jnp.bfloat16 else jnp.float32

    # Fold BN into conv0 / conv1 / conv2 (the final 1x1 conv has no BN).
    w0f, b0f = _fold_bn(params["w0"], params["b0"], params["bn0"])
    w1f, b1f = _fold_bn(params["w1"], params["b1"], params["bn1"])
    w2f, b2f = _fold_bn(params["w2"], params["b2"], params["bn2"])

    w0m = w0f.reshape(Cr, C).astype(mxu_dtype)              # (Cr, C)  MXU operand
    b0v = b0f.reshape(Cr, 1).astype(jnp.float32)
    # im2col weight layout: column block t = kh*3+kw holds the (Cr_out, Cr_in)
    # slice for that tap  ->  w_mat[co, t*Cr + ci] = conv_w[co, ci, kh, kw]
    w1m = jnp.transpose(w1f, (0, 2, 3, 1)).reshape(Cr, 9 * Cr).astype(jnp.float32)
    w2m = jnp.transpose(w2f, (0, 2, 3, 1)).reshape(Cr, 9 * Cr).astype(jnp.float32)
    b1v = b1f.reshape(Cr, 1).astype(jnp.float32)
    b2v = b2f.reshape(Cr, 1).astype(jnp.float32)
    wfm = params["wf"].reshape(1, Cr).astype(jnp.float32)
    bfv = params["bf"].reshape(1, 1).astype(jnp.float32)

    # Tap offsets of the dilated 3x3 conv: tap index t = kh*3 + kw.
    taps = [((kh - 1) * dil, (kw - 1) * dil) for kh in range(3) for kw in range(3)]
    offsets = [dh * W + dw for dh, dw in taps]

    # Host-precomputed zero-padding masks, one row per tap (resident VMEM const).
    pos = np.arange(S_pad)
    row, col = pos // W, pos % W
    masks_np = np.stack(
        [((row + dh >= 0) & (row + dh < H) &
          (col + dw >= 0) & (col + dw < W) & (pos < S)).astype(np.float32)
         for dh, dw in taps], axis=0)                        # (9, S_pad)
    masks = jnp.asarray(masks_np)

    roll_is_np = _roll_follows_numpy()

    def _shift(v, off):
        # z[..., i] == v[..., (i + off) % S_pad]; the masks zero every position
        # whose true conv tap is out of bounds, so the circular wrap never leaks
        # (exact zero-padding semantics). Valid taps never reach the pad columns.
        if off == 0:
            return v
        amt = (-off) % S_pad if roll_is_np else off % S_pad
        return pltpu.roll(v, amt, 1)

    def kernel(x_ref, w0_ref, b0_ref, w1_ref, b1_ref, w2_ref, b2_ref,
               wf_ref, bf_ref, mask_ref, o_ref):
        x = x_ref[0]                                          # (C, S_pad), native dtype

        # -- 1x1 reduce conv (C -> Cr) + folded BN + ReLU: one lane-dense MXU matmul
        h = jnp.dot(w0_ref[...], x, preferred_element_type=jnp.float32)
        h = jnp.maximum(h + b0_ref[...], 0.0)                 # (Cr, S_pad) f32

        m = mask_ref[...]                                     # (9, S_pad) f32

        def dilated_conv_relu(hin, w_ref, b_ref):
            # 3x3 conv, dilation=dil, padding=dil (Cr -> Cr), BN folded, then ReLU.
            # im2col: 9 masked/rolled copies stacked to (9*Cr, S_pad), one MXU dot.
            cols = [_shift(hin, off) * m[t:t + 1, :]
                    for t, off in enumerate(offsets)]
            im2col = jnp.concatenate(cols, axis=0)            # (9*Cr, S_pad)
            out = jnp.dot(w_ref[...], im2col,
                          preferred_element_type=jnp.float32)
            return jnp.maximum(out + b_ref[...], 0.0)         # (Cr, S_pad)

        h = dilated_conv_relu(h, w1_ref, b1_ref)
        h = dilated_conv_relu(h, w2_ref, b2_ref)

        # -- final 1x1 conv (Cr -> 1, bias, no BN / no activation): one MXU matvec
        g = jnp.dot(wf_ref[...], h, preferred_element_type=jnp.float32) + bf_ref[...]

        # Only the gate map is written back (expand_as is done by the caller).
        o_ref[0] = g.astype(o_ref.dtype)                      # (1, S_pad)

    x_flat = x_nchw.reshape(B, C, S)
    if S_pad != S:
        x_flat = jnp.pad(x_flat, ((0, 0), (0, 0), (0, S_pad - S)))

    # VMEM budget derived from actual block / live-temp sizes (+2x headroom),
    # capped below v7x's 64 MiB physical VMEM.
    isz = jnp.dtype(in_dtype).itemsize
    block_bytes = (2 * C * S_pad * isz            # x block, double-buffered
                   + 2 * S_pad * isz              # gate output block, double-buffered
                   + 9 * S_pad * 4                # resident masks
                   + (Cr * C + 3 * Cr + 2 * 9 * Cr * Cr + Cr + 1) * 4)
    temp_bytes = (Cr + 2 * 9 * Cr + 2) * S_pad * 4  # h + shifted copies + im2col + gate
    vmem_limit = int(min(max(2 * (block_bytes + temp_bytes), 8 << 20), 48 << 20))

    const2 = lambda b: (0, 0)
    gate = pl.pallas_call(
        kernel,
        out_shape=jax.ShapeDtypeStruct((B, 1, S_pad), in_dtype),
        grid=(B,),
        in_specs=[
            pl.BlockSpec((1, C, S_pad), lambda b: (b, 0, 0)),   # x, lane-dense over S
            pl.BlockSpec((Cr, C), const2),                      # folded 1x1 weight
            pl.BlockSpec((Cr, 1), const2),                      # folded 1x1 bias
            pl.BlockSpec((Cr, 9 * Cr), const2),                 # dilated conv 1 (im2col w)
            pl.BlockSpec((Cr, 1), const2),
            pl.BlockSpec((Cr, 9 * Cr), const2),                 # dilated conv 2 (im2col w)
            pl.BlockSpec((Cr, 1), const2),
            pl.BlockSpec((1, Cr), const2),                      # final 1x1 weight
            pl.BlockSpec((1, 1), const2),                       # final 1x1 bias
            pl.BlockSpec((9, S_pad), const2),                   # boundary masks
        ],
        out_specs=pl.BlockSpec((1, 1, S_pad), lambda b: (b, 0, 0)),
        compiler_params=pltpu.CompilerParams(
            dimension_semantics=("parallel",),
            vmem_limit_bytes=vmem_limit,
        ),
    )(x_flat, w0m, b0v, w1m, b1v, w2m, b2v, wfm, bfv, masks)

    # expand_as(in_tensor): broadcast OUTSIDE the kernel so the expanded tensor is
    # never written from the kernel; XLA fuses this into the downstream consumer.
    gate = gate[:, :, :S].reshape(B, 1, H, W)
    return jnp.broadcast_to(gate, (B, C, H, W))


# ---------------------------------------------------------------------------
# deterministic parameters (PyTorch layout: OIHW conv weights, eval-mode BN)
# ---------------------------------------------------------------------------
def init_params(key, gate_channel, reduction_ratio=16):
    Cr = gate_channel // reduction_ratio
    assert Cr >= 1, "gate_channel must be >= reduction_ratio"
    ks = jax.random.split(key, 11)

    def conv_w(k, shape):
        fan_in = int(np.prod(shape[1:]))
        return jax.random.normal(k, shape, jnp.float32) / np.sqrt(fan_in)

    def bn_p(k, n):
        k1, k2, k3, k4 = jax.random.split(k, 4)
        gamma = 1.0 + 0.2 * jax.random.normal(k1, (n,), jnp.float32)
        beta = 0.1 * jax.random.normal(k2, (n,), jnp.float32)
        mean = 0.1 * jax.random.normal(k3, (n,), jnp.float32)
        var = 0.5 + jax.random.uniform(k4, (n,), jnp.float32)
        return (gamma, beta, mean, var)

    return {
        "w0": conv_w(ks[0], (Cr, gate_channel, 1, 1)),
        "b0": 0.1 * jax.random.normal(ks[1], (Cr,), jnp.float32),
        "bn0": bn_p(ks[2], Cr),
        "w1": conv_w(ks[3], (Cr, Cr, 3, 3)),
        "b1": 0.1 * jax.random.normal(ks[4], (Cr,), jnp.float32),
        "bn1": bn_p(ks[5], Cr),
        "w2": conv_w(ks[6], (Cr, Cr, 3, 3)),
        "b2": 0.1 * jax.random.normal(ks[7], (Cr,), jnp.float32),
        "bn2": bn_p(ks[8], Cr),
        "wf": conv_w(ks[9], (1, Cr, 1, 1)),
        "bf": 0.1 * jax.random.normal(ks[10], (1,), jnp.float32),
    }


# ---------------------------------------------------------------------------
# plain-JAX reference
# ---------------------------------------------------------------------------
def spatial_gate_reference(x, params, dilation_val=4, eps=_BN_EPS):
    def conv(h, w, b, pad, dil):
        out = jax.lax.conv_general_dilated(
            h, w, window_strides=(1, 1),
            padding=((pad, pad), (pad, pad)),
            rhs_dilation=(dil, dil),
            dimension_numbers=("NCHW", "OIHW", "NCHW"),
            precision=jax.lax.Precision.HIGHEST)
        return out + b[None, :, None, None]

    def bn(h, p):
        gamma, beta, mean, var = p
        scale = gamma / jnp.sqrt(var + eps)
        return ((h - mean[None, :, None, None]) * scale[None, :, None, None]
                + beta[None, :, None, None])

    h = jax.nn.relu(bn(conv(x, params["w0"], params["b0"], 0, 1), params["bn0"]))
    h = jax.nn.relu(bn(conv(h, params["w1"], params["b1"], dilation_val,
                            dilation_val), params["bn1"]))
    h = jax.nn.relu(bn(conv(h, params["w2"], params["b2"], dilation_val,
                            dilation_val), params["bn2"]))
    g = conv(h, params["wf"], params["bf"], 0, 1)            # (B, 1, H, W)
    return jnp.broadcast_to(g, x.shape)                      # expand_as(in_tensor)


if __name__ == "__main__":
    key = jax.random.PRNGKey(0)
    kx, kp = jax.random.split(key)
    # gate_channel=32, reduction_ratio=16 -> Cr=2 ; dilation_val=4 ; 16x16 spatial
    B, C, H, W = 2, 32, 16, 16
    x = jax.random.normal(kx, (B, C, H, W), jnp.float32)
    params = init_params(kp, C)

    out = jax.block_until_ready(bam_spatial_gate(x, params))

    ref = spatial_gate_reference(x, params)
    np.testing.assert_allclose(np.asarray(out), np.asarray(ref),
                               rtol=1e-4, atol=1e-4)
    print("KERNEL_OK")
</pallas_src>

<mosaic_0001>
module attributes {stable_mosaic.version = 11 : i64} {
  func.func @_roll_probe_kernel(%arg0: memref<8x128xf32, #tpu.memory_space<vmem>>, %arg1: memref<8x128xf32, #tpu.memory_space<vmem>>) attributes {dimension_semantics = [], scalar_prefetch = 0 : i64, scratch_operands = 0 : i64, tpu.core_type = #tpu.core_type<tc>} {
    %c0 = arith.constant 0 : index
    %c0_0 = arith.constant 0 : index
    %0 = vector.load %arg0[%c0, %c0_0] : memref<8x128xf32, #tpu.memory_space<vmem>>, vector<8x128xf32>
    %c1_i32 = arith.constant 1 : i32
    %1 = tpu.dynamic_rotate %0 by %c1_i32 dim 1 : vector<8x128xf32>, i32 -> vector<8x128xf32>
    %c0_1 = arith.constant 0 : index
    %c0_2 = arith.constant 0 : index
    %2 = vector.load %arg1[%c0_1, %c0_2] : memref<8x128xf32, #tpu.memory_space<vmem>>, vector<8x128xf32>
    tpu.vector_store %arg1[%c0_1, %c0_2], %1 {strides = array<i32>} : memref<8x128xf32, #tpu.memory_space<vmem>>, vector<8x128xf32>,
    return
  }
}

</mosaic_0001>

<llo_original>
// kernel: tpu_custom_call.1
$region0: #{tpu_custom_call.1}
  #allocation0 [shape = 'u32[]', space=smem, size = 0x4, offset = 0x4, fixed_abs, tag = 'smem constant byte address 0x4 - core index']
  #allocation1 [shape = 'u32[144,128]{1,0:T(1,128)}', space=vmem, size = 0x12000, scoped, tag = 'internal scratch']
  %s0 = inlined_call_operand.hbm [shape: f32[8,128], index: 0, kind: input, shape index: {}]
  %s1 = inlined_call_operand.hbm [shape: f32[8,128], index: 1, kind: output, shape index: {}]
  %s2 = sld [smem:[#allocation0]]
  $region18: #{tpu_custom_call.1} parent=0
    _
  %s4 = ssub.s32 1, %s2
  %s5 = scalar_select 0, %s4, %s2
  $region1: #{tpu_custom_call.1} parent=0
    #allocation2 [shape = 'u8[4096]{0}', space=vmem, size = 0x1000, scoped, tag = 'input window, operand 0, single buffered']
    #allocation3 [shape = 's32[1]{0}', space=sflag, size = 0x4, scoped, tag = 'scoped memory for tpu_custom_call.1']
    #allocation4 [shape = 's32[1]{0}', space=sflag, size = 0x4, scoped, tag = 'scoped memory for tpu_custom_call.1']
    #allocation5 [shape = 'u8[4096]{0}', space=vmem, size = 0x1000, scoped, tag = 'output window, operand 0, single buffered']
    %6 = vsyncpa [#allocation3], 0
    %7 = vsyncpa [#allocation4], 0
    // Predicated region
    $region2: #{tpu_custom_call.1} parent=1 // pred_check
      _
    $region3: #{tpu_custom_call.1} parent=1 // pred_check_branch
      %9 = sbr.rel (0) target = $region5
    $region4: #{tpu_custom_call.1} parent=1 // pred_region
      %s11 = ssub.s32 128, 128
      %12 = vsyncadd [#allocation3], %s11
      %s14 = sshll.u32 [#allocation2], 4
      %s15 = int_to_ptr.vmem [resolvable:$true] %s14
      %17 = dma.hbm_to_vmem [thread:$0]  %s0, 128, %s15, [#allocation3]
    $region5: #{tpu_custom_call.1} parent=1 // pred_fallthru
      _
    // Predicated region
    $region6: #{tpu_custom_call.1} parent=1 // pred_check
      _
    $region7: #{tpu_custom_call.1} parent=1 // pred_check_branch
      %19 = sbr.rel (0) target = $region9
    $region8: #{tpu_custom_call.1} parent=1 // pred_region
      %20 = dma.done [#allocation3], 128
    $region9: #{tpu_custom_call.1} parent=1 // pred_fallthru
      _
    %v21 = vld [vmem:[#allocation2] sm:$0xff]
    %22 = vrot.lane.b32.xlu0 %v21, 1
    %v23 = vpop.permute.xlu0 %22
    %24 = vst [vmem:[#allocation5] sm:$0xff] %v23
    // Predicated region
    $region10: #{tpu_custom_call.1} parent=1 // pred_check
      _
    $region11: #{tpu_custom_call.1} parent=1 // pred_check_branch
      %26 = sbr.rel (0) target = $region13
    $region12: #{tpu_custom_call.1} parent=1 // pred_region
      %s28 = ssub.s32 128, 128
      %29 = vsyncadd [#allocation4], %s28
      %s31 = sshll.u32 [#allocation5], 4
      %s32 = int_to_ptr.vmem [resolvable:$true] %s31
      %34 = dma.vmem_to_hbm [thread:$0]  %s32, 128, %s1, [#allocation4]
    $region13: #{tpu_custom_call.1} parent=1 // pred_fallthru
      _
    // Predicated region
    $region14: #{tpu_custom_call.1} parent=1 // pred_check
      _
    $region15: #{tpu_custom_call.1} parent=1 // pred_check_branch
      %36 = sbr.rel (0) target = $region17
    $region16: #{tpu_custom_call.1} parent=1 // pred_region
      %37 = dma.done [#allocation4], 128
    $region17: #{tpu_custom_call.1} parent=1 // pred_fallthru
      _
    %38 = vsyncpa [#allocation3], 1
    %39 = vsyncpa [#allocation4], 1

</llo_original>
